<compile_context>
chip_gen: v7x
topology: tpu7x:2x2x1
jax: 0.10.0
libtpu: 0.0.40
codegen_flags: <defaults>
</compile_context>

<pallas_src>
import math

import jax
import jax.numpy as jnp
from jax.experimental import pallas as pl
from jax.experimental.pallas import tpu as pltpu


def se_block_kernel(x_ref, w1_ref, b1_ref, w2_ref, b2_ref, out_ref, score_ref):
    """One batch element per grid step.

    x_ref:     (C, HW)   input slab (input dtype)
    w1_ref:    (hid, C)  Linear1 weight
    b1_ref:    (hid, 1)  Linear1 bias (column)
    w2_ref:    (C, hid)  Linear2 weight
    b2_ref:    (C, 1)    Linear2 bias (column)
    out_ref:   (C, HW)   relu(mc*x + x)
    score_ref: (C, 1)    channel attention mc
    """
    x = x_ref[...]                                   # (C, HW), input dtype
    hw = x.shape[-1]

    # Squeeze: global average pool over the spatial (lane) axis, f32 accumulate.
    pooled = jnp.mean(x, axis=-1, keepdims=True, dtype=jnp.float32)      # (C, 1)

    # Excitation MLP, column-major so channels stay on sublanes throughout.
    h = jnp.dot(w1_ref[...], pooled, preferred_element_type=jnp.float32)
    h = jnp.maximum(h + b1_ref[...], 0.0)                                # (hid, 1)
    a = jnp.dot(w2_ref[...], h, preferred_element_type=jnp.float32) + b2_ref[...]
    mc = jax.nn.sigmoid(a)                                               # (C, 1)
    score_ref[...] = mc.astype(score_ref.dtype)

    # Fused scale + residual + ReLU:  relu(mc*x + x) == relu((1 + mc) * x).
    scale = (mc + 1.0).astype(x.dtype)                                   # (C, 1)
    out_ref[...] = jnp.maximum(scale * x, 0.0).astype(out_ref.dtype)


def se_block(x_nchw, w1, b1, w2, b2):
    """x_nchw: (B, C, H, W). Returns (out (B,C,H,W), score (B,C,1,1))."""
    B, C, H, W = x_nchw.shape
    HW = H * W
    hid = w1.shape[0]

    x3 = x_nchw.reshape(B, C, HW)
    b1c = b1.reshape(hid, 1)
    b2c = b2.reshape(C, 1)

    # VMEM budget: in + out slabs, double-buffered, plus params and headroom.
    itemsize = jnp.dtype(x_nchw.dtype).itemsize
    blk_bytes = C * HW * itemsize
    param_bytes = (w1.size + w2.size + b1.size + b2.size) * 4
    needed = 4 * blk_bytes + param_bytes + (2 << 20)
    vmem_limit = int(min(max(needed, 32 << 20), 48 << 20))   # cap for v7x (64 MiB phys)

    out3, score = pl.pallas_call(
        se_block_kernel,
        out_shape=(
            jax.ShapeDtypeStruct((B, C, HW), x_nchw.dtype),
            jax.ShapeDtypeStruct((B, C, 1), jnp.float32),
        ),
        grid=(B,),
        in_specs=[
            pl.BlockSpec((None, C, HW), lambda b: (b, 0, 0)),   # per-batch slab
            pl.BlockSpec((hid, C), lambda b: (0, 0)),           # weights: fetched once
            pl.BlockSpec((hid, 1), lambda b: (0, 0)),
            pl.BlockSpec((C, hid), lambda b: (0, 0)),
            pl.BlockSpec((C, 1), lambda b: (0, 0)),
        ],
        out_specs=(
            pl.BlockSpec((None, C, HW), lambda b: (b, 0, 0)),
            pl.BlockSpec((None, C, 1), lambda b: (b, 0, 0)),
        ),
        compiler_params=pltpu.CompilerParams(
            dimension_semantics=("parallel",),     # shard batch across TCs (v7x)
            vmem_limit_bytes=vmem_limit,
        ),
    )(x3, w1, b1c, w2, b2c)

    return out3.reshape(B, C, H, W), score.reshape(B, C, 1, 1)


def _reference(x, w1, b1, w2, b2):
    """Pure-JAX reference matching the PyTorch forward."""
    avg = jnp.mean(x, axis=(2, 3))                          # (B, C)
    h = jnp.maximum(avg @ w1.T + b1, 0.0)                   # (B, hid)
    a = h @ w2.T + b2                                       # (B, C)
    mc = jax.nn.sigmoid(a)                                  # (B, C)
    score = mc[:, :, None, None]
    out = jnp.maximum(score * x + x, 0.0)
    return out, score


if __name__ == "__main__":
    # Small shapes consistent with the module: batch=2, in_channel=8,
    # reduction_ratio=4 -> hid_channel=2, spatial 16x16.
    B, C, H, W = 2, 8, 16, 16
    reduction_ratio = 4
    hid = C // reduction_ratio

    key = jax.random.PRNGKey(0)
    kx, k1, k2, k3, k4 = jax.random.split(key, 5)

    x = jax.random.normal(kx, (B, C, H, W), dtype=jnp.float32)

    # Deterministic init mimicking nn.Linear (uniform(-1/sqrt(fan_in), +...)).
    bound1 = 1.0 / math.sqrt(C)
    w1 = jax.random.uniform(k1, (hid, C), jnp.float32, -bound1, bound1)
    b1 = jax.random.uniform(k2, (hid,), jnp.float32, -bound1, bound1)
    bound2 = 1.0 / math.sqrt(hid)
    w2 = jax.random.uniform(k3, (C, hid), jnp.float32, -bound2, bound2)
    b2 = jax.random.uniform(k4, (C,), jnp.float32, -bound2, bound2)

    out, score = se_block(x, w1, b1, w2, b2)
    out = jax.block_until_ready(out)
    score = jax.block_until_ready(score)

    out_ref, score_ref = _reference(x, w1, b1, w2, b2)
    assert jnp.allclose(out, out_ref, atol=1e-5, rtol=1e-5)
    assert jnp.allclose(score, score_ref, atol=1e-5, rtol=1e-5)

    print("KERNEL_OK")
</pallas_src>

<mosaic_0001>
module attributes {stable_mosaic.version = 11 : i64} {
  func.func @se_block_kernel(%arg0: i32, %arg1: memref<1x8x256xf32, #tpu.memory_space<vmem>>, %arg2: memref<2x8xf32, #tpu.memory_space<vmem>>, %arg3: memref<2x1xf32, #tpu.memory_space<vmem>>, %arg4: memref<8x2xf32, #tpu.memory_space<vmem>>, %arg5: memref<8x1xf32, #tpu.memory_space<vmem>>, %arg6: memref<1x8x256xf32, #tpu.memory_space<vmem>>, %arg7: memref<1x8x1xf32, #tpu.memory_space<vmem>>) attributes {dimension_semantics = [#tpu.dimension_semantics<parallel>], iteration_bounds = array<i64: 2>, scalar_prefetch = 0 : i64, scratch_operands = 0 : i64, tpu.core_type = #tpu.core_type<tc>, window_params = [{transform_indices = @transform_0, window_bounds = array<i64: 1, 8, 256>}, {pipeline_mode = #tpu.pipeline_mode<synchronous>, transform_indices = @transform_1, window_bounds = array<i64: 2, 8>}, {pipeline_mode = #tpu.pipeline_mode<synchronous>, transform_indices = @transform_2, window_bounds = array<i64: 2, 1>}, {pipeline_mode = #tpu.pipeline_mode<synchronous>, transform_indices = @transform_3, window_bounds = array<i64: 8, 2>}, {pipeline_mode = #tpu.pipeline_mode<synchronous>, transform_indices = @transform_4, window_bounds = array<i64: 8, 1>}, {transform_indices = @transform_5, window_bounds = array<i64: 1, 8, 256>}, {transform_indices = @transform_6, window_bounds = array<i64: 1, 8, 1>}]} {
    %c0 = arith.constant 0 : index
    %c0_0 = arith.constant 0 : index
    %c0_1 = arith.constant 0 : index
    %0 = vector.load %arg1[%c0, %c0_0, %c0_1] : memref<1x8x256xf32, #tpu.memory_space<vmem>>, vector<1x8x256xf32>
    %1 = vector.shape_cast %0 : vector<1x8x256xf32> to vector<8x256xf32>
    %cst = arith.constant dense<0.000000e+00> : vector<8xf32>
    %2 = vector.multi_reduction <add>, %1, %cst [1] : vector<8x256xf32> to vector<8xf32>
    %3 = vector.shape_cast %2 : vector<8xf32> to vector<8x1xf32>
    %cst_2 = arith.constant 2.560000e+02 : f32
    %4 = vector.broadcast %cst_2 : f32 to vector<8x1xf32>
    %5 = arith.divf %3, %4 : vector<8x1xf32>
    %c0_3 = arith.constant 0 : index
    %c0_4 = arith.constant 0 : index
    %6 = vector.load %arg2[%c0_3, %c0_4] : memref<2x8xf32, #tpu.memory_space<vmem>>, vector<2x8xf32>
    %cst_5 = arith.constant dense<0.000000e+00> : vector<2x1xf32>
    %7 = tpu.matmul %6, %5, %cst_5 {dimension_numbers = #tpu.dot_dimension_numbers<[1], [0], [0], [1], [0, 0, 1, 1], [], []>} : vector<2x8xf32>, vector<8x1xf32>, vector<2x1xf32> -> vector<2x1xf32>
    %c0_6 = arith.constant 0 : index
    %c0_7 = arith.constant 0 : index
    %8 = vector.load %arg3[%c0_6, %c0_7] : memref<2x1xf32, #tpu.memory_space<vmem>>, vector<2x1xf32>
    %9 = arith.addf %7, %8 : vector<2x1xf32>
    %cst_8 = arith.constant 0.000000e+00 : f32
    %10 = vector.broadcast %cst_8 : f32 to vector<2x1xf32>
    %11 = arith.maximumf %9, %10 : vector<2x1xf32>
    %c0_9 = arith.constant 0 : index
    %c0_10 = arith.constant 0 : index
    %12 = vector.load %arg4[%c0_9, %c0_10] : memref<8x2xf32, #tpu.memory_space<vmem>>, vector<8x2xf32>
    %cst_11 = arith.constant dense<0.000000e+00> : vector<8x1xf32>
    %13 = tpu.matmul %12, %11, %cst_11 {dimension_numbers = #tpu.dot_dimension_numbers<[1], [0], [0], [1], [0, 0, 1, 1], [], []>} : vector<8x2xf32>, vector<2x1xf32>, vector<8x1xf32> -> vector<8x1xf32>
    %c0_12 = arith.constant 0 : index
    %c0_13 = arith.constant 0 : index
    %14 = vector.load %arg5[%c0_12, %c0_13] : memref<8x1xf32, #tpu.memory_space<vmem>>, vector<8x1xf32>
    %15 = arith.addf %13, %14 : vector<8x1xf32>
    %16 = arith.negf %15 : vector<8x1xf32>
    %17 = math.exp %16 : vector<8x1xf32>
    %cst_14 = arith.constant 1.000000e+00 : f32
    %18 = vector.broadcast %cst_14 : f32 to vector<8x1xf32>
    %19 = arith.addf %18, %17 : vector<8x1xf32>
    %20 = arith.divf %18, %19 : vector<8x1xf32>
    %c0_15 = arith.constant 0 : index
    %c0_16 = arith.constant 0 : index
    %c0_17 = arith.constant 0 : index
    %21 = vector.load %arg7[%c0_15, %c0_16, %c0_17] : memref<1x8x1xf32, #tpu.memory_space<vmem>>, vector<1x8x1xf32>
    %22 = vector.shape_cast %21 : vector<1x8x1xf32> to vector<8x1xf32>
    %23 = vector.shape_cast %20 : vector<8x1xf32> to vector<1x8x1xf32>
    tpu.vector_store %arg7[%c0_15, %c0_16, %c0_17], %23 {strides = array<i32>} : memref<1x8x1xf32, #tpu.memory_space<vmem>>, vector<1x8x1xf32>,
    %cst_18 = arith.constant 1.000000e+00 : f32
    %24 = vector.broadcast %cst_18 : f32 to vector<8x1xf32>
    %25 = arith.addf %20, %24 : vector<8x1xf32>
    %26 = vector.broadcast %25 : vector<8x1xf32> to vector<8x256xf32>
    %27 = arith.mulf %26, %1 : vector<8x256xf32>
    %cst_19 = arith.constant 0.000000e+00 : f32
    %28 = vector.broadcast %cst_19 : f32 to vector<8x256xf32>
    %29 = arith.maximumf %27, %28 : vector<8x256xf32>
    %c0_20 = arith.constant 0 : index
    %c0_21 = arith.constant 0 : index
    %c0_22 = arith.constant 0 : index
    %30 = vector.load %arg6[%c0_20, %c0_21, %c0_22] : memref<1x8x256xf32, #tpu.memory_space<vmem>>, vector<1x8x256xf32>
    %31 = vector.shape_cast %30 : vector<1x8x256xf32> to vector<8x256xf32>
    %32 = vector.shape_cast %29 : vector<8x256xf32> to vector<1x8x256xf32>
    tpu.vector_store %arg6[%c0_20, %c0_21, %c0_22], %32 {strides = array<i32>} : memref<1x8x256xf32, #tpu.memory_space<vmem>>, vector<1x8x256xf32>,
    return
  }
  func.func @transform_0(%arg0: i32) -> (i32, i32, i32) {
    %c0_i32 = arith.constant 0 : i32
    %c0_i32_0 = arith.constant 0 : i32
    %c0_i32_1 = arith.constant 0 : i32
    return %arg0, %c0_i32, %c0_i32_0 : i32, i32, i32
  }
  func.func @transform_1(%arg0: i32) -> (i32, i32) {
    %c0_i32 = arith.constant 0 : i32
    %c0_i32_0 = arith.constant 0 : i32
    %c0_i32_1 = arith.constant 0 : i32
    return %c0_i32, %c0_i32_0 : i32, i32
  }
  func.func @transform_2(%arg0: i32) -> (i32, i32) {
    %c0_i32 = arith.constant 0 : i32
    %c0_i32_0 = arith.constant 0 : i32
    %c0_i32_1 = arith.constant 0 : i32
    return %c0_i32, %c0_i32_0 : i32, i32
  }
  func.func @transform_3(%arg0: i32) -> (i32, i32) {
    %c0_i32 = arith.constant 0 : i32
    %c0_i32_0 = arith.constant 0 : i32
    %c0_i32_1 = arith.constant 0 : i32
    return %c0_i32, %c0_i32_0 : i32, i32
  }
  func.func @transform_4(%arg0: i32) -> (i32, i32) {
    %c0_i32 = arith.constant 0 : i32
    %c0_i32_0 = arith.constant 0 : i32
    %c0_i32_1 = arith.constant 0 : i32
    return %c0_i32, %c0_i32_0 : i32, i32
  }
  func.func @transform_5(%arg0: i32) -> (i32, i32, i32) {
    %c0_i32 = arith.constant 0 : i32
    %c0_i32_0 = arith.constant 0 : i32
    %c0_i32_1 = arith.constant 0 : i32
    return %arg0, %c0_i32, %c0_i32_0 : i32, i32, i32
  }
  func.func @transform_6(%arg0: i32) -> (i32, i32, i32) {
    %c0_i32 = arith.constant 0 : i32
    %c0_i32_0 = arith.constant 0 : i32
    %c0_i32_1 = arith.constant 0 : i32
    return %arg0, %c0_i32, %c0_i32_0 : i32, i32, i32
  }
}

</mosaic_0001>

<llo_original>
// kernel: tpu_custom_call.1
$region0: #{tpu_custom_call.1}
  #allocation0 [shape = 'u32[]', space=smem, size = 0x4, offset = 0x4, fixed_abs, tag = 'smem constant byte address 0x4 - core index']
  #allocation1 [shape = 'u32[144,128]{1,0:T(1,128)}', space=vmem, size = 0x12000, scoped, tag = 'internal scratch']
  %s0 = inlined_call_operand.hbm [shape: f32[2,8,256], index: 0, kind: input, shape index: {}]
  %s1 = inlined_call_operand.vmem [shape: f32[2,8], index: 1, kind: input, shape index: {}]
  %s2 = inlined_call_operand.vmem [shape: f32[2,1], index: 2, kind: input, shape index: {}]
  %s3 = inlined_call_operand.vmem [shape: f32[8,2], index: 3, kind: input, shape index: {}]
  %s4 = inlined_call_operand.vmem [shape: f32[8,1], index: 4, kind: input, shape index: {}]
  %s5 = inlined_call_operand.hbm [shape: f32[2,8,256], index: 5, kind: output, shape index: {0}]
  %s6 = inlined_call_operand.vmem [shape: f32[2,8,1], index: 6, kind: output, shape index: {1}]
  %7 = xla_tuple %s5, %s6
  %s8 = sld [smem:[#allocation0]]
  $region65: #{tpu_custom_call.1} parent=0
    _
  %s10 = ssub.s32 1, %s8
  %s11 = scalar_select 0, %s10, %s8
  $region1: #{tpu_custom_call.1} parent=0
    #allocation2 [shape = 'u8[16384]{0}', space=vmem, size = 0x4000, scoped, tag = 'input window, operand 0']
    #allocation3 [shape = 's32[2]{0}', space=sflag, size = 0x8, scoped, tag = 'scoped memory for tpu_custom_call.1']
    #allocation4 [shape = 's32[2]{0}', space=sflag, size = 0x8, scoped, tag = 'scoped memory for tpu_custom_call.1']
    #allocation5 [shape = 'u8[16384]{0}', space=vmem, size = 0x4000, scoped, tag = 'output window, operand 0']
    %12 = vsyncpa [#allocation3], 0
    %s13 = scalar_lea.sflag [#allocation3], 1
    %14 = vsyncpa %s13, 0
    %15 = vsyncpa [#allocation4], 0
    %s16 = scalar_lea.sflag [#allocation4], 1
    %17 = vsyncpa %s16, 0
    loop: start=0, step=1, limit=4
    $region2: #{tpu_custom_call.1} parent=1 // loop_pre_header
      _
    $region3: #{tpu_custom_call.1} parent=1 // loop_header
      %s19 = sphi 0, %s23
      %p20 = scmp.ge.s32.totalorder %s19, 4
      %s29 = sphi 0, %s31
      %s32 = sphi 0, %s29
      %s33 = sphi 0, %s32
      %s49 = sphi 0, %s33
      %s53 = sphi 0, %s53
      %s55 = sphi 0, %s53
      %s56 = sphi 0, %s55
      %s70 = sphi 0, %s56
      %s74 = sphi 0, %s74
      %s76 = sphi 0, %s74
      %s77 = sphi 0, %s76
      %s91 = sphi 0, %s77
      %s95 = sphi 0, %s95
      %s97 = sphi 0, %s95
      %s98 = sphi 0, %s97
      %s112 = sphi 0, %s98
      %s116 = sphi 0, %s116
      %s118 = sphi 0, %s116
      %s119 = sphi 0, %s118
      %s133 = sphi 0, %s119
      %s139 = sphi 0, %s141
      %s142 = sphi 0, %s139
      %s143 = sphi 0, %s142
      %s159 = sphi 0, %s143
      %s165 = sphi 0, %s167
      %s168 = sphi 0, %s165
      %s169 = sphi 0, %s168
      %s185 = sphi 0, %s169
    $region4: #{tpu_custom_call.1} parent=1 // loop_header_branch
      %22 = sbr.rel (%p20) target = $region8
    $region5: #{tpu_custom_call.1} parent=1 // loop_body
      %s24 = ssub.s32 %s19, 1
      %s25 = ssub.s32 %s19, 2
      %s26 = sadd.s32 %s19, 1
      %s27 = ssub.s32 %s19, %s26
      %p28 = scmp.eq.s32.totalorder %s27, 0
      %s30 = sadd.s32 %s29, 1
      %s31 = scalar_select %p28, %s29, %s30
      %p34 = pneg %p28
      %p35 = scmp.eq.s32.totalorder %s19, 1
      %p36 = por %p34, %p35
      %p37 = scmp.ne.s32.totalorder %s29, %s32
      %p38 = scmp.eq.s32.totalorder %s19, 0
      %p39 = por %p37, %p38
      %p40 = scmp.ne.s32.totalorder %s29, %s32
      %p41 = scmp.eq.s32.totalorder %s24, 1
      %p42 = por %p40, %p41
      %p43 = scmp.ne.s32.totalorder %s32, %s33
      %p44 = scmp.eq.s32.totalorder %s24, 0
      %p45 = por %p43, %p44
      %p46 = scmp.ne.s32.totalorder %s32, %s33
      %p47 = scmp.eq.s32.totalorder %s25, 1
      %p48 = por %p46, %p47
      %p50 = scmp.ne.s32.totalorder %s33, %s49
      %p51 = scmp.eq.s32.totalorder %s25, 0
      %p52 = por %p50, %p51
      %s54 = sadd.s32 %s53, 1
      %p57 = scmp.eq.s32.totalorder %s19, 1
      %p58 = scmp.ne.s32.totalorder %s53, %s55
      %p59 = scmp.eq.s32.totalorder %s19, 0
      %p60 = por %p58, %p59
      %p61 = scmp.ne.s32.totalorder %s53, %s55
      %p62 = scmp.eq.s32.totalorder %s24, 1
      %p63 = por %p61, %p62
      %p64 = scmp.ne.s32.totalorder %s55, %s56
      %p65 = scmp.eq.s32.totalorder %s24, 0
      %p66 = por %p64, %p65
      %p67 = scmp.ne.s32.totalorder %s55, %s56
      %p68 = scmp.eq.s32.totalorder %s25, 1
      %p69 = por %p67, %p68
      %p71 = scmp.ne.s32.totalorder %s56, %s70
      %p72 = scmp.eq.s32.totalorder %s25, 0
      %p73 = por %p71, %p72
      %s75 = sadd.s32 %s74, 1
      %p78 = scmp.eq.s32.totalorder %s19, 1
      %p79 = scmp.ne.s32.totalorder %s74, %s76
      %p80 = scmp.eq.s32.totalorder %s19, 0
      %p81 = por %p79, %p80
      %p82 = scmp.ne.s32.totalorder %s74, %s76
      %p83 = scmp.eq.s32.totalorder %s24, 1
      %p84 = por %p82, %p83
      %p85 = scmp.ne.s32.totalorder %s76, %s77
      %p86 = scmp.eq.s32.totalorder %s24, 0
      %p87 = por %p85, %p86
      %p88 = scmp.ne.s32.totalorder %s76, %s77
      %p89 = scmp.eq.s32.totalorder %s25, 1
      %p90 = por %p88, %p89
      %p92 = scmp.ne.s32.totalorder %s77, %s91
      %p93 = scmp.eq.s32.totalorder %s25, 0
      %p94 = por %p92, %p93
      %s96 = sadd.s32 %s95, 1
      %p99 = scmp.eq.s32.totalorder %s19, 1
      %p100 = scmp.ne.s32.totalorder %s95, %s97
      %p101 = scmp.eq.s32.totalorder %s19, 0
      %p102 = por %p100, %p101
      %p103 = scmp.ne.s32.totalorder %s95, %s97
      %p104 = scmp.eq.s32.totalorder %s24, 1
      %p105 = por %p103, %p104
      %p106 = scmp.ne.s32.totalorder %s97, %s98
      %p107 = scmp.eq.s32.totalorder %s24, 0
      %p108 = por %p106, %p107
      %p109 = scmp.ne.s32.totalorder %s97, %s98
      %p110 = scmp.eq.s32.totalorder %s25, 1
      %p111 = por %p109, %p110
      %p113 = scmp.ne.s32.totalorder %s98, %s112
      %p114 = scmp.eq.s32.totalorder %s25, 0
      %p115 = por %p113, %p114
      %s117 = sadd.s32 %s116, 1
      %p120 = scmp.eq.s32.totalorder %s19, 1
      %p121 = scmp.ne.s32.totalorder %s116, %s118
      %p122 = scmp.eq.s32.totalorder %s19, 0
      %p123 = por %p121, %p122
      %p124 = scmp.ne.s32.totalorder %s116, %s118
      %p125 = scmp.eq.s32.totalorder %s24, 1
      %p126 = por %p124, %p125
      %p127 = scmp.ne.s32.totalorder %s118, %s119
      %p128 = scmp.eq.s32.totalorder %s24, 0
      %p129 = por %p127, %p128
      %p130 = scmp.ne.s32.totalorder %s118, %s119
      %p131 = scmp.eq.s32.totalorder %s25, 1
      %p132 = por %p130, %p131
      %p134 = scmp.ne.s32.totalorder %s119, %s133
      %p135 = scmp.eq.s32.totalorder %s25, 0
      %p136 = por %p134, %p135
      %s137 = ssub.s32 %s19, %s26
      %p138 = scmp.eq.s32.totalorder %s137, 0
      %s140 = sadd.s32 %s139, 1
      %s141 = scalar_select %p138, %s139, %s140
      %p144 = pneg %p138
      %p145 = scmp.eq.s32.totalorder %s19, 1
      %p146 = por %p144, %p145
      %p147 = scmp.ne.s32.totalorder %s139, %s142
      %p148 = scmp.eq.s32.totalorder %s19, 0
      %p149 = por %p147, %p148
      %p150 = scmp.ne.s32.totalorder %s139, %s142
      %p151 = scmp.eq.s32.totalorder %s24, 1
      %p152 = por %p150, %p151
      %p153 = scmp.ne.s32.totalorder %s142, %s143
      %p154 = scmp.eq.s32.totalorder %s24, 0
      %p155 = por %p153, %p154
      %p156 = scmp.ne.s32.totalorder %s142, %s143
      %p157 = scmp.eq.s32.totalorder %s25, 1
      %p158 = por %p156, %p157
      %p160 = scmp.ne.s32.totalorder %s143, %s159
      %p161 = scmp.eq.s32.totalorder %s25, 0
      %p162 = por %p160, %p161
      %s163 = ssub.s32 %s19, %s26
      %p164 = scmp.eq.s32.totalorder %s163, 0
      %s166 = sadd.s32 %s165, 1
      %s167 = scalar_select %p164, %s165, %s166
      %p170 = pneg %p164
      %p171 = scmp.eq.s32.totalorder %s19, 1
      %p172 = por %p170, %p171
      %p173 = scmp.ne.s32.totalorder %s165, %s168
      %p174 = scmp.eq.s32.totalorder %s19, 0
      %p175 = por %p173, %p174
      %p176 = scmp.ne.s32.totalorder %s165, %s168
      %p177 = scmp.eq.s32.totalorder %s24, 1
      %p178 = por %p176, %p177
      %p179 = scmp.ne.s32.totalorder %s168, %s169
      %p180 = scmp.eq.s32.totalorder %s24, 0
      %p181 = por %p179, %p180
      %p182 = scmp.ne.s32.totalorder %s168, %s169
      %p183 = scmp.eq.s32.totalorder %s25, 1
      %p184 = por %p182, %p183
      %p186 = scmp.ne.s32.totalorder %s169, %s185
      %p187 = scmp.eq.s32.totalorder %s25, 0
      %p188 = por %p186, %p187
      %p189 = scmp.le.s32.totalorder 1, %s19
      %p190 = scmp.lt.s32.totalorder %s19, 3
      %p191 = pnand %p189, %p190
      %p192 = pneg %p191
      // Predicated region
      $region9: #{tpu_custom_call.1} parent=5 // pred_check
        _
      $region10: #{tpu_custom_call.1} parent=5 // pred_check_branch
        %194 = sbr.rel (%p191) target = $region12
      $region11: #{tpu_custom_call.1} parent=5 // pred_region
        %s195 = ssub.s32 %s19, 1
        // Predicated region
        $region13: #{tpu_custom_call.1} parent=11 // pred_check
          %p196 = pneg %p66
        $region14: #{tpu_custom_call.1} parent=11 // pred_check_branch
          %198 = sbr.rel (%p196) target = $region16
        $region15: #{tpu_custom_call.1} parent=11 // pred_region
          _
        $region16: #{tpu_custom_call.1} parent=11 // pred_fallthru
          _
        // Predicated region
        $region17: #{tpu_custom_call.1} parent=11 // pred_check
          %p199 = pneg %p87
        $region18: #{tpu_custom_call.1} parent=11 // pred_check_branch
          %201 = sbr.rel (%p199) target = $region20
        $region19: #{tpu_custom_call.1} parent=11 // pred_region
          _
        $region20: #{tpu_custom_call.1} parent=11 // pred_fallthru
          _
        // Predicated region
        $region21: #{tpu_custom_call.1} parent=11 // pred_check
          %p202 = pneg %p108
        $region22: #{tpu_custom_call.1} parent=11 // pred_check_branch
          %204 = sbr.rel (%p202) target = $region24
        $region23: #{tpu_custom_call.1} parent=11 // pred_region
          _
        $region24: #{tpu_custom_call.1} parent=11 // pred_fallthru
          _
        // Predicated region
        $region25: #{tpu_custom_call.1} parent=11 // pred_check
          %p205 = pneg %p129
        $region26: #{tpu_custom_call.1} parent=11 // pred_check_branch
          %207 = sbr.rel (%p205) target = $region28
        $region27: #{tpu_custom_call.1} parent=11 // pred_region
          _
        $region28: #{tpu_custom_call.1} parent=11 // pred_fallthru
          _
      $region12: #{tpu_custom_call.1} parent=5 // pred_fallthru
        _
      %p208 = scmp.lt.s32.totalorder %s19, 2
      // Predicated region
      $region29: #{tpu_custom_call.1} parent=5 // pred_check
        %p209 = pneg %p208
      $region30: #{tpu_custom_call.1} parent=5 // pred_check_branch
        %211 = sbr.rel (%p209) target = $region32
      $region31: #{tpu_custom_call.1} parent=5 // pred_region
        // Predicated region
        $region33: #{tpu_custom_call.1} parent=31 // pred_check
          %p212 = pneg %p39
        $region34: #{tpu_custom_call.1} parent=31 // pred_check_branch
          %214 = sbr.rel (%p212) target = $region36
        $region35: #{tpu_custom_call.1} parent=31 // pred_region
          %s215 = sand.u32 %s29, 1
          %s216 = scalar_lea.sflag [#allocation3], %s215
          %s217 = sand.u32 %s29, 1
          %s218 = smul.addr %s217, 16
          %s219 = scalar_lea.vmem [#allocation2], %s218
          %s221 = ssub.s32 256, 256
          %222 = vsyncadd %s216, %s221
          %s223 = smul.addr %s19, 2
          %s224 = smul.addr %s223, 128
          %s225 = scalar_lea.hbm %s0, %s224
          %s227 = sshll.u32 %s219, 4
          %s228 = int_to_ptr.vmem [resolvable:$true] %s227
          %230 = dma.hbm_to_vmem [thread:$0]  %s225, 256, %s228, %s216
        $region36: #{tpu_custom_call.1} parent=31 // pred_fallthru
          _
      $region32: #{tpu_custom_call.1} parent=5 // pred_fallthru
        _
      %p231 = scmp.le.s32.totalorder 1, %s19
      %p232 = scmp.lt.s32.totalorder %s19, 3
      %p233 = pnand %p231, %p232
      %p234 = pneg %p233
      // Predicated region
      $region37: #{tpu_custom_call.1} parent=5 // pred_check
        _
      $region38: #{tpu_custom_call.1} parent=5 // pred_check_branch
        %236 = sbr.rel (%p233) target = $region40
      $region39: #{tpu_custom_call.1} parent=5 // pred_region
        %s237 = ssub.s32 %s19, 1
        %s238 = sand.u32 %s32, 1
        %s239 = scalar_lea.sflag [#allocation3], %s238
        %s240 = sand.u32 %s32, 1
        %s241 = smul.addr %s240, 16
        %s242 = scalar_lea.vmem [#allocation2], %s241
        // Predicated region
        $region41: #{tpu_custom_call.1} parent=39 // pred_check
          %p243 = pneg %p45
        $region42: #{tpu_custom_call.1} parent=39 // pred_check_branch
          %245 = sbr.rel (%p243) target = $region44
        $region43: #{tpu_custom_call.1} parent=39 // pred_region
          %246 = dma.done %s239, 256
        $region44: #{tpu_custom_call.1} parent=39 // pred_fallthru
          _
        %s247 = sand.u32 %s32, 1
        %s248 = scalar_lea.sflag [#allocation3], %s247
        %s249 = sand.u32 %s32, 1
        %s250 = smul.addr %s249, 16
        %s251 = scalar_lea.vmem [#allocation2], %s250
        %p252 = pneg %p45
        %p253 = pneg %p42
        %p254 = pneg %p66
        %p255 = pneg %p63
        %p256 = pneg %p87
        %p257 = pneg %p84
        %p258 = pneg %p108
        %p259 = pneg %p105
        %p260 = pneg %p129
        %p261 = pneg %p126
        %p262 = pneg %p155
        %p263 = pneg %p152
        %s264 = sand.u32 %s142, 1
        %s265 = scalar_lea.sflag [#allocation4], %s264
        %s266 = sand.u32 %s142, 1
        %s267 = smul.addr %s266, 16
        %s268 = scalar_lea.vmem [#allocation5], %s267
        %p269 = pneg %p181
        %p270 = pneg %p178
        %p271 = scmp.lt.s32.totalorder %s24, 1
        %s272 = scalar_select %p271, %s24, 1
        %s273 = smul.addr %s272, 8
        %s274 = scalar_lea.vmem %s6, %s273
        %p275 = scmp.lt.s32.totalorder %s24, 1
        %s276 = scalar_select %p275, %s24, 1
        %s277 = smul.addr %s276, 8
        %s278 = scalar_lea.vmem %s6, %s277
        %v279 = vld [vmem:[%s242] sm:$0xff]
        %v280 = vld [vmem:[%s242 + $0x8] sm:$0xff]
        %v281 = vadd.f32 %v279, %v280
        %282 = vadd.xlane.f32.xlu0 %v281
        %v283 = vpop.xlane.xlu0 %282
        %v284 = vrcp.pop 256.0
        %v285 = vmul.f32 %v283, %v284
        %v286 = vld [vmem:[%s1] sm:$0x3]
        %v287 = vld [vmem:[%s2] sm:$0x3]
        %vm288 = vcmask 64512
        %v290 = vsel %vm288, %v286, 0
        %292 = vmatprep.subr.mxu0 0.0
        %293 = vmatpush1.msra.mxu0 %v285
        %294 = vmatprep.subr.mxu0 0.0
        %295 = vmatpush1.msra.mxu0 0.0
        %296 = vmatprep.subr.mxu0 0.0
        %297 = vmatpush1.msra.mxu0 0.0
        %298 = vmatprep.subr.mxu0 0.0
        %299 = vmatpush1.msra.mxu0 0.0
        %300 = vmatprep.subr.mxu0 0.0
        %301 = vmatpush1.msra.mxu0 0.0
        %302 = vmatprep.subr.mxu0 0.0
        %303 = vmatpush1.msra.mxu0 0.0
        %304 = vmatprep.subr.mxu0 0.0
        %305 = vmatpush1.msra.mxu0 0.0
        %306 = vmatprep.subr.mxu0 0.0
        %307 = vmatpush1.msra.mxu0 0.0
        %308 = vmatprep.subr.mxu0 0.0
        %309 = vmatpush1.msra.mxu0 0.0
        %310 = vmatprep.subr.mxu0 0.0
        %311 = vmatpush1.msra.mxu0 0.0
        %312 = vmatprep.subr.mxu0 0.0
        %313 = vmatpush1.msra.mxu0 0.0
        %314 = vmatprep.subr.mxu0 0.0
        %315 = vmatpush1.msra.mxu0 0.0
        %316 = vmatprep.subr.mxu0 0.0
        %317 = vmatpush1.msra.mxu0 0.0
        %318 = vmatprep.subr.mxu0 0.0
        %319 = vmatpush1.msra.mxu0 0.0
        %320 = vmatprep.subr.mxu0 0.0
        %321 = vmatpush1.msra.mxu0 0.0
        %322 = vmatprep.subr.mxu0 0.0
        %323 = vmatpush1.msra.mxu0 0.0
        %324 = vmatprep.subr.mxu0 0.0
        %325 = vmatpush1.msra.mxu0 0.0
        %326 = vmatprep.subr.mxu0 0.0
        %327 = vmatpush1.msra.mxu0 0.0
        %328 = vmatprep.subr.mxu0 0.0
        %329 = vmatpush1.msra.mxu0 0.0
        %330 = vmatprep.subr.mxu0 0.0
        %331 = vmatpush1.msra.mxu0 0.0
        %332 = vmatprep.subr.mxu0 0.0
        %333 = vmatpush1.msra.mxu0 0.0
        %334 = vmatprep.subr.mxu0 0.0
        %335 = vmatpush1.msra.mxu0 0.0
        %336 = vmatprep.subr.mxu0 0.0
        %337 = vmatpush1.msra.mxu0 0.0
        %338 = vmatprep.subr.mxu0 0.0
        %339 = vmatpush1.msra.mxu0 0.0
        %340 = vmatprep.subr.mxu0 0.0
        %341 = vmatpush1.msra.mxu0 0.0
        %342 = vmatprep.subr.mxu0 0.0
        %343 = vmatpush1.msra.mxu0 0.0
        %344 = vmatprep.subr.mxu0 0.0
        %345 = vmatpush1.msra.mxu0 0.0
        %346 = vmatprep.subr.mxu0 0.0
        %347 = vmatpush1.msra.mxu0 0.0
        %348 = vmatprep.subr.mxu0 0.0
        %349 = vmatpush1.msra.mxu0 0.0
        %350 = vmatprep.subr.mxu0 0.0
        %351 = vmatpush1.msra.mxu0 0.0
        %352 = vmatprep.subr.mxu0 0.0
        %353 = vmatpush1.msra.mxu0 0.0
        %354 = vmatprep.subr.mxu0 0.0
        %355 = vmatpush1.msra.mxu0 0.0
        %356 = vmatprep.mubr.f32.mxu0 0.0
        %357 = vmatmul.mubr.f32.gmra.mrb[0].mxu0 %v290
        %v358 = vpop.f32.mrb[0].mxu0
        %v359 = vadd.f32 %v287, %v358
        %v360 = vpop.f32.mrb[0].mxu0
        %361 = vdwg.mxu0
        %v362 = vmax.f32 %v359, 0.0
        %v363 = vld [vmem:[%s3] sm:$0xff]
        %v364 = vld [vmem:[%s4] sm:$0xff]
        %vm365 = vcmask 15360
        %v367 = vsel %vm365, %v363, 0
        %vm369 = vcmask 1041408
        %v371 = vsel %vm369, %v362, 0
        %373 = vmatprep.subr.mxu0 0.0
        %374 = vmatpush1.msra.mxu0 %v371
        %375 = vmatprep.subr.mxu0 0.0
        %376 = vmatpush1.msra.mxu0 0.0
        %377 = vmatprep.subr.mxu0 0.0
        %378 = vmatpush1.msra.mxu0 0.0
        %379 = vmatprep.subr.mxu0 0.0
        %380 = vmatpush1.msra.mxu0 0.0
        %381 = vmatprep.subr.mxu0 0.0
        %382 = vmatpush1.msra.mxu0 0.0
        %383 = vmatprep.subr.mxu0 0.0
        %384 = vmatpush1.msra.mxu0 0.0
        %385 = vmatprep.subr.mxu0 0.0
        %386 = vmatpush1.msra.mxu0 0.0
        %387 = vmatprep.subr.mxu0 0.0
        %388 = vmatpush1.msra.mxu0 0.0
        %389 = vmatprep.subr.mxu0 0.0
        %390 = vmatpush1.msra.mxu0 0.0
        %391 = vmatprep.subr.mxu0 0.0
        %392 = vmatpush1.msra.mxu0 0.0
        %393 = vmatprep.subr.mxu0 0.0
        %394 = vmatpush1.msra.mxu0 0.0
        %395 = vmatprep.subr.mxu0 0.0
        %396 = vmatpush1.msra.mxu0 0.0
        %397 = vmatprep.subr.mxu0 0.0
        %398 = vmatpush1.msra.mxu0 0.0
        %399 = vmatprep.subr.mxu0 0.0
        %400 = vmatpush1.msra.mxu0 0.0
        %401 = vmatprep.subr.mxu0 0.0
        %402 = vmatpush1.msra.mxu0 0.0
        %403 = vmatprep.subr.mxu0 0.0
        %404 = vmatpush1.msra.mxu0 0.0
        %405 = vmatprep.subr.mxu0 0.0
        %406 = vmatpush1.msra.mxu0 0.0
        %407 = vmatprep.subr.mxu0 0.0
        %408 = vmatpush1.msra.mxu0 0.0
        %409 = vmatprep.subr.mxu0 0.0
        %410 = vmatpush1.msra.mxu0 0.0
        %411 = vmatprep.subr.mxu0 0.0
        %412 = vmatpush1.msra.mxu0 0.0
        %413 = vmatprep.subr.mxu0 0.0
        %414 = vmatpush1.msra.mxu0 0.0
        %415 = vmatprep.subr.mxu0 0.0
        %416 = vmatpush1.msra.mxu0 0.0
        %417 = vmatprep.subr.mxu0 0.0
        %418 = vmatpush1.msra.mxu0 0.0
        %419 = vmatprep.subr.mxu0 0.0
        %420 = vmatpush1.msra.mxu0 0.0
        %421 = vmatprep.subr.mxu0 0.0
        %422 = vmatpush1.msra.mxu0 0.0
        %423 = vmatprep.subr.mxu0 0.0
        %424 = vmatpush1.msra.mxu0 0.0
        %425 = vmatprep.subr.mxu0 0.0
        %426 = vmatpush1.msra.mxu0 0.0
        %427 = vmatprep.subr.mxu0 0.0
        %428 = vmatpush1.msra.mxu0 0.0
        %429 = vmatprep.subr.mxu0 0.0
        %430 = vmatpush1.msra.mxu0 0.0
        %431 = vmatprep.subr.mxu0 0.0
        %432 = vmatpush1.msra.mxu0 0.0
        %433 = vmatprep.subr.mxu0 0.0
        %434 = vmatpush1.msra.mxu0 0.0
        %435 = vmatprep.subr.mxu0 0.0
        %436 = vmatpush1.msra.mxu0 0.0
        %437 = vmatprep.mubr.f32.mxu0 0.0
        %438 = vmatmul.mubr.f32.gmra.mrb[0].mxu0 %v367
        %v439 = vpop.f32.mrb[0].mxu0
        %v440 = vadd.f32 %v364, %v439
        %v441 = vpop.f32.mrb[0].mxu0
        %442 = vdwg.mxu0
        %v443 = vxor.u32 %v440, 2147483648
        %v444 = vmul.f32 %v443, 1.442695
        %v445 = vpow.pop %v444
        %v446 = vadd.f32 %v445, 1.0
        %v447 = vrcp.pop %v446
        %v448 = vmul.f32 1.0, %v447
        %vm449 = vcmask 7168
        %450 = vst.msk [vmem:[%s278] sm:$0xff] %vm449, %v448
        %v451 = vadd.f32 %v448, 1.0
        %453 = vset.pattern.permute.xlu0 0
        %454 = vperm.xlu0 %453, %v451
        %v455 = vpop.permute.xlu0 %454
        %v457 = vmul.f32 %v455, %v279
        %v458 = vmul.f32 %v455, %v280
        %v459 = vmax.f32 %v457, 0.0
        %v460 = vmax.f32 %v458, 0.0
        %461 = vst [vmem:[%s268] sm:$0xff] %v459
        %462 = vst [vmem:[%s268 + $0x8] sm:$0xff] %v460
        %s463 = sand.u32 %s142, 1
        %s464 = scalar_lea.sflag [#allocation4], %s463
        %s465 = sand.u32 %s142, 1
        %s466 = smul.addr %s465, 16
        %s467 = scalar_lea.vmem [#allocation5], %s466
        %p468 = scmp.lt.s32.totalorder %s24, 1
        %s469 = scalar_select %p468, %s24, 1
        %s470 = smul.addr %s469, 8
        %s471 = scalar_lea.vmem %s6, %s470
        // Predicated region
        $region45: #{tpu_custom_call.1} parent=39 // pred_check
          %p472 = pneg %p152
        $region46: #{tpu_custom_call.1} parent=39 // pred_check_branch
          %474 = sbr.rel (%p472) target = $region48
        $region47: #{tpu_custom_call.1} parent=39 // pred_region
          %s476 = ssub.s32 256, 256
          %477 = vsyncadd %s464, %s476
          %s478 = smul.addr %s24, 2
          %s479 = smul.addr %s478, 128
          %s480 = scalar_lea.hbm %s5, %s479
          %s482 = sshll.u32 %s467, 4
          %s483 = int_to_ptr.vmem [resolvable:$true] %s482
          %485 = dma.vmem_to_hbm [thread:$0]  %s483, 256, %s480, %s464
        $region48: #{tpu_custom_call.1} parent=39 // pred_fallthru
          _
        // Predicated region
        $region49: #{tpu_custom_call.1} parent=39 // pred_check
          %p486 = pneg %p178
        $region50: #{tpu_custom_call.1} parent=39 // pred_check_branch
          %488 = sbr.rel (%p486) target = $region52
        $region51: #{tpu_custom_call.1} parent=39 // pred_region
          _
        $region52: #{tpu_custom_call.1} parent=39 // pred_fallthru
          _
      $region40: #{tpu_custom_call.1} parent=5 // pred_fallthru
        _
      %p489 = scmp.le.s32.totalorder 2, %s19
      // Predicated region
      $region53: #{tpu_custom_call.1} parent=5 // pred_check
        %p490 = pneg %p489
      $region54: #{tpu_custom_call.1} parent=5 // pred_check_branch
        %492 = sbr.rel (%p490) target = $region56
      $region55: #{tpu_custom_call.1} parent=5 // pred_region
        %s493 = ssub.s32 %s19, 2
        // Predicated region
        $region57: #{tpu_custom_call.1} parent=55 // pred_check
          %p494 = pneg %p158
        $region58: #{tpu_custom_call.1} parent=55 // pred_check_branch
          %496 = sbr.rel (%p494) target = $region60
        $region59: #{tpu_custom_call.1} parent=55 // pred_region
          %s497 = sand.u32 %s143, 1
          %s498 = scalar_lea.sflag [#allocation4], %s497
          %s499 = sand.u32 %s143, 1
          %s500 = smul.addr %s499, 16
          %s501 = scalar_lea.vmem [#allocation5], %s500
          %502 = dma.done %s498, 256
        $region60: #{tpu_custom_call.1} parent=55 // pred_fallthru
          _
        // Predicated region
        $region61: #{tpu_custom_call.1} parent=55 // pred_check
          %p503 = pneg %p184
        $region62: #{tpu_custom_call.1} parent=55 // pred_check_branch
          %505 = sbr.rel (%p503) target = $region64
        $region63: #{tpu_custom_call.1} parent=55 // pred_region
          %p506 = scmp.lt.s32.totalorder %s25, 1
          %s507 = scalar_select %p506, %s25, 1
          %s508 = smul.addr %s507, 8
          %s509 = scalar_lea.vmem %s6, %s508
        $region64: #{tpu_custom_call.1} parent=55 // pred_fallthru
          _
      $region56: #{tpu_custom_call.1} parent=5 // pred_fallthru
        _
    $region6: #{tpu_custom_call.1} parent=1 // loop_footer
      %s23 = sadd.s32 1, %s19
    $region7: #{tpu_custom_call.1} parent=1 // loop_footer_branch
      %18 = sbr.rel target = $region3
    $region8: #{tpu_custom_call.1} parent=1 // loop_exit
      _
    %510 = vsyncpa [#allocation3], 1
    %s511 = scalar_lea.sflag [#allocation3], 1
    %512 = vsyncpa %s511, 1
    %513 = vsyncpa [#allocation4], 1
    %s514 = scalar_lea.sflag [#allocation4], 1
    %515 = vsyncpa %s514, 1

</llo_original>
